<compile_context>
chip_gen: v7x
topology: tpu7x:2x2x1
jax: 0.10.0
libtpu: 0.0.40
codegen_flags: <defaults>
</compile_context>

<pallas_src>
import functools
import math

import jax
import jax.numpy as jnp
from jax.experimental import pallas as pl
from jax.experimental.pallas import tpu as pltpu

_LANE = 128


def _pe_dropout_kernel(seed_ref, x_ref, pe_ref, o_ref, *, p, n_cols, tile):
    # x_ref: (B, TILE), pe_ref: (1, TILE), seed_ref: (1,) int32 in SMEM.
    x = x_ref[...].astype(jnp.float32) + pe_ref[...].astype(jnp.float32)

    if p > 0.0:
        shape = x.shape
        # Global element index (unique across tiles and rows) -> per-element,
        # per-seed hash. Counter-based, so tiles are automatically decorrelated.
        rows = jax.lax.broadcasted_iota(jnp.int32, shape, 0)
        cols = jax.lax.broadcasted_iota(jnp.int32, shape, 1)
        col_base = pl.program_id(0) * tile
        idx = (rows * n_cols + col_base + cols).astype(jnp.uint32)

        seed_u = seed_ref[0].astype(jnp.uint32)
        h = idx ^ (seed_u * jnp.uint32(0x9E3779B9))
        h = h ^ (h >> 16)
        h = h * jnp.uint32(0x7FEB352D)
        h = h ^ (h >> 15)
        h = h * jnp.uint32(0x846CA68B)
        h = h ^ (h >> 16)

        # keep with prob (1 - p): compare raw bits against a uint32 threshold.
        threshold = jnp.uint32(min(int(round(p * 4294967296.0)), 0xFFFFFFFF))
        keep = h >= threshold
        scale = jnp.float32(1.0 / (1.0 - p))  # compile-time constant
        x = jnp.where(keep, x * scale, jnp.float32(0.0))

    o_ref[...] = x.astype(o_ref.dtype)


def make_pe_table(d_model, max_len=500):
    """Sinusoidal positional-embedding buffer, shape (1, max_len, d_model)."""
    position = jnp.arange(max_len, dtype=jnp.float32)[:, None]
    div_term = jnp.exp(
        jnp.arange(0, d_model, 2, dtype=jnp.float32) * (-math.log(10000.0) / d_model)
    )
    pe = jnp.zeros((max_len, d_model), dtype=jnp.float32)
    pe = pe.at[:, 0::2].set(jnp.sin(position * div_term))
    pe = pe.at[:, 1::2].set(jnp.cos(position * div_term))
    return pe[None]  # (1, max_len, d_model)


def _choose_tile(n_cols_padded, batch, bytes_per_elem=4,
                 vmem_budget_bytes=6 * 1024 * 1024):
    # Double-buffered working set per grid step:
    #   2 * (x_block + out_block + pe_block) = 2 * (2*B + 1) * TILE * 4 bytes.
    # Keep it under ~6 MiB so it fits the 16 MiB (v5e) / 32 MiB (v6e, v7x)
    # scoped-VMEM defaults with plenty of headroom.
    per_col = 2 * (2 * batch + 1) * bytes_per_elem
    tile = vmem_budget_bytes // per_col
    tile = max(_LANE, (tile // _LANE) * _LANE)
    tile = min(tile, 512 * _LANE)  # big enough to amortize per-step overhead
    return min(tile, n_cols_padded)


def positional_embedding(embed, pe, seed, p=0.1):
    """embed: (B, S, D); pe: (1, max_len, D) f32; returns (B, S, D).

    NOTE: `seed` should be varied per training step by the caller so dropout
    masks differ across steps (same contract as torch's global RNG state).
    """
    assert 0.0 <= p < 1.0
    B, S, D = embed.shape
    N = S * D
    n_pad = ((N + _LANE - 1) // _LANE) * _LANE  # lane-dense last dim

    x2d = embed.reshape(B, N)
    pe2d = jax.lax.slice(pe, (0, 0, 0), (1, S, D)).reshape(1, N)  # tiny buffer
    if n_pad != N:
        x2d = jnp.pad(x2d, ((0, 0), (0, n_pad - N)))
        pe2d = jnp.pad(pe2d, ((0, 0), (0, n_pad - N)))

    tile = _choose_tile(n_pad, B)
    grid = (pl.cdiv(n_pad, tile),)

    kernel = functools.partial(
        _pe_dropout_kernel, p=float(p), n_cols=n_pad, tile=tile
    )
    seed_arr = jnp.asarray([seed], dtype=jnp.int32)

    out2d = pl.pallas_call(
        kernel,
        out_shape=jax.ShapeDtypeStruct((B, n_pad), embed.dtype),
        grid=grid,
        in_specs=[
            pl.BlockSpec(memory_space=pltpu.MemorySpace.SMEM),  # seed scalar
            pl.BlockSpec((B, tile), lambda j: (0, j)),          # embed tile
            pl.BlockSpec((1, tile), lambda j: (0, j)),          # PE tile (batch-shared)
        ],
        out_specs=pl.BlockSpec((B, tile), lambda j: (0, j)),
        compiler_params=pltpu.CompilerParams(
            dimension_semantics=("parallel",)
        ),
    )(seed_arr, x2d, pe2d)

    if n_pad != N:
        out2d = out2d[:, :N]
    return out2d.reshape(B, S, D)


if __name__ == "__main__":
    batch, seq_len, d_model = 2, 8, 32
    key = jax.random.PRNGKey(0)
    embed = jax.random.normal(key, (batch, seq_len, d_model), dtype=jnp.float32)

    pe = make_pe_table(d_model, max_len=500)

    # Training mode: PE add + dropout(p=0.1) inside the kernel.
    p = 0.1
    out_train = positional_embedding(embed, pe, seed=1234, p=p)
    jax.block_until_ready(out_train)

    # Eval mode (dropout disabled): must exactly match embed + pe[:, :S].
    out_eval = positional_embedding(embed, pe, seed=0, p=0.0)
    jax.block_until_ready(out_eval)
    full = embed + pe[:, :seq_len, :]
    assert jnp.allclose(out_eval, full, atol=1e-6), "eval-mode mismatch"

    # Training-mode structural check: every element is either dropped (0) or
    # the PE-added value scaled by 1/(1-p).
    scaled = full / (1.0 - p)
    ok = jnp.logical_or(
        jnp.isclose(out_train, 0.0, atol=1e-6),
        jnp.isclose(out_train, scaled, atol=1e-5),
    )
    assert bool(jnp.all(ok)), "train-mode dropout structure mismatch"
    assert out_train.shape == (batch, seq_len, d_model)

    print("KERNEL_OK")
</pallas_src>

<mosaic_0001>
module attributes {stable_mosaic.version = 11 : i64} {
  func.func @_pe_dropout_kernel(%arg0: i32, %arg1: memref<1xi32, #tpu.memory_space<smem>>, %arg2: memref<2x256xf32, #tpu.memory_space<vmem>>, %arg3: memref<1x256xf32, #tpu.memory_space<vmem>>, %arg4: memref<2x256xf32, #tpu.memory_space<vmem>>) attributes {dimension_semantics = [#tpu.dimension_semantics<parallel>], iteration_bounds = array<i64: 1>, scalar_prefetch = 0 : i64, scratch_operands = 0 : i64, tpu.core_type = #tpu.core_type<tc>, window_params = [{transform_indices = @transform_0, window_bounds = array<i64: 1>}, {transform_indices = @transform_1, window_bounds = array<i64: 2, 256>}, {transform_indices = @transform_2, window_bounds = array<i64: 1, 256>}, {transform_indices = @transform_3, window_bounds = array<i64: 2, 256>}]} {
    %c0 = arith.constant 0 : index
    %c0_0 = arith.constant 0 : index
    %0 = vector.load %arg2[%c0, %c0_0] : memref<2x256xf32, #tpu.memory_space<vmem>>, vector<2x256xf32>
    %c0_1 = arith.constant 0 : index
    %c0_2 = arith.constant 0 : index
    %1 = vector.load %arg3[%c0_1, %c0_2] : memref<1x256xf32, #tpu.memory_space<vmem>>, vector<1x256xf32>
    %2 = vector.broadcast %1 : vector<1x256xf32> to vector<2x256xf32>
    %3 = arith.addf %0, %2 : vector<2x256xf32>
    %4 = tpu.iota {dimensions = array<i32: 0>} : vector<2x256xi32>
    %5 = tpu.iota {dimensions = array<i32: 1>} : vector<2x256xi32>
    %c256_i32 = arith.constant 256 : i32
    %6 = arith.muli %arg0, %c256_i32 : i32
    %c256_i32_3 = arith.constant 256 : i32
    %7 = vector.broadcast %c256_i32_3 : i32 to vector<2x256xi32>
    %8 = arith.muli %4, %7 : vector<2x256xi32>
    %9 = vector.broadcast %6 : i32 to vector<2x256xi32>
    %10 = arith.addi %8, %9 : vector<2x256xi32>
    %11 = arith.addi %10, %5 : vector<2x256xi32>
    %c0_4 = arith.constant 0 : index
    %12 = memref.load %arg1[%c0_4] : memref<1xi32, #tpu.memory_space<smem>>
    %c-1640531527_i32 = arith.constant -1640531527 : i32
    %13 = arith.muli %12, %c-1640531527_i32 : i32
    %14 = vector.broadcast %13 : i32 to vector<2x256xi32>
    %15 = arith.xori %11, %14 : vector<2x256xi32>
    %c16_i32 = arith.constant 16 : i32
    %16 = vector.broadcast %c16_i32 : i32 to vector<2x256xi32>
    %17 = arith.shrui %15, %16 : vector<2x256xi32>
    %18 = arith.xori %15, %17 : vector<2x256xi32>
    %c2146121005_i32 = arith.constant 2146121005 : i32
    %19 = vector.broadcast %c2146121005_i32 : i32 to vector<2x256xi32>
    %20 = arith.muli %18, %19 : vector<2x256xi32>
    %c15_i32 = arith.constant 15 : i32
    %21 = vector.broadcast %c15_i32 : i32 to vector<2x256xi32>
    %22 = arith.shrui %20, %21 : vector<2x256xi32>
    %23 = arith.xori %20, %22 : vector<2x256xi32>
    %c-2073254261_i32 = arith.constant -2073254261 : i32
    %24 = vector.broadcast %c-2073254261_i32 : i32 to vector<2x256xi32>
    %25 = arith.muli %23, %24 : vector<2x256xi32>
    %c16_i32_5 = arith.constant 16 : i32
    %26 = vector.broadcast %c16_i32_5 : i32 to vector<2x256xi32>
    %27 = arith.shrui %25, %26 : vector<2x256xi32>
    %28 = arith.xori %25, %27 : vector<2x256xi32>
    %c429496730_i32 = arith.constant 429496730 : i32
    %29 = vector.broadcast %c429496730_i32 : i32 to vector<2x256xi32>
    %30 = arith.cmpi uge, %28, %29 : vector<2x256xi32>
    %cst = arith.constant 1.11111116 : f32
    %31 = vector.broadcast %cst : f32 to vector<2x256xf32>
    %32 = arith.mulf %3, %31 : vector<2x256xf32>
    %cst_6 = arith.constant 0.000000e+00 : f32
    %33 = vector.broadcast %cst_6 : f32 to vector<2x256xf32>
    %34 = arith.select %30, %32, %33 : vector<2x256xi1>, vector<2x256xf32>
    %c0_7 = arith.constant 0 : index
    %c0_8 = arith.constant 0 : index
    %35 = vector.load %arg4[%c0_7, %c0_8] : memref<2x256xf32, #tpu.memory_space<vmem>>, vector<2x256xf32>
    tpu.vector_store %arg4[%c0_7, %c0_8], %34 {strides = array<i32>} : memref<2x256xf32, #tpu.memory_space<vmem>>, vector<2x256xf32>,
    return
  }
  func.func @transform_0(%arg0: i32) -> i32 {
    %c0_i32 = arith.constant 0 : i32
    %c0_i32_0 = arith.constant 0 : i32
    return %c0_i32 : i32
  }
  func.func @transform_1(%arg0: i32) -> (i32, i32) {
    %c0_i32 = arith.constant 0 : i32
    %c0_i32_0 = arith.constant 0 : i32
    return %c0_i32, %arg0 : i32, i32
  }
  func.func @transform_2(%arg0: i32) -> (i32, i32) {
    %c0_i32 = arith.constant 0 : i32
    %c0_i32_0 = arith.constant 0 : i32
    return %c0_i32, %arg0 : i32, i32
  }
  func.func @transform_3(%arg0: i32) -> (i32, i32) {
    %c0_i32 = arith.constant 0 : i32
    %c0_i32_0 = arith.constant 0 : i32
    return %c0_i32, %arg0 : i32, i32
  }
}

</mosaic_0001>

<llo_original>
// kernel: tpu_custom_call.1
$region0: #{tpu_custom_call.1}
  #allocation0 [shape = 'u32[]', space=smem, size = 0x4, offset = 0x4, fixed_abs, tag = 'smem constant byte address 0x4 - core index']
  #allocation1 [shape = 'u32[144,128]{1,0:T(1,128)}', space=vmem, size = 0x12000, scoped, tag = 'internal scratch']
  #allocation2 [shape = 's32[1]{0:T(128)S(6)}', space=smem, size = 0x200, scoped, tag = 'scoped memory for tpu_custom_call.1']
  %s0 = inlined_call_operand.<no memory space> [shape: s32[1], index: 0, kind: input, shape index: {}]
  %s1 = inlined_call_operand.hbm [shape: f32[2,256], index: 1, kind: input, shape index: {}]
  %s2 = inlined_call_operand.vmem [shape: f32[1,256], index: 2, kind: input, shape index: {}]
  %s3 = inlined_call_operand.hbm [shape: f32[2,256], index: 3, kind: output, shape index: {}]
  %s4 = sld [smem:[#allocation0]]
  $region26: #{tpu_custom_call.1} parent=0
    _
  %s6 = ssub.s32 1, %s4
  %s7 = scalar_select 0, %s6, %s4
  %8 = sst [smem:[#allocation2]] %s0
  $region1: #{tpu_custom_call.1} parent=0
    #allocation3 [shape = 'u8[2048]{0}', space=vmem, size = 0x800, scoped, tag = 'input window, operand 1, single buffered']
    #allocation4 [shape = 's32[1]{0}', space=sflag, size = 0x4, scoped, tag = 'scoped memory for tpu_custom_call.1']
    #allocation5 [shape = 's32[1]{0}', space=sflag, size = 0x4, scoped, tag = 'scoped memory for tpu_custom_call.1']
    #allocation6 [shape = 'u8[2048]{0}', space=vmem, size = 0x800, scoped, tag = 'output window, operand 0, single buffered']
    %9 = vsyncpa [#allocation4], 0
    %10 = vsyncpa [#allocation5], 0
    // Predicated region
    $region2: #{tpu_custom_call.1} parent=1 // pred_check
      _
    $region3: #{tpu_custom_call.1} parent=1 // pred_check_branch
      %12 = sbr.rel (0) target = $region5
    $region4: #{tpu_custom_call.1} parent=1 // pred_region
      _
    $region5: #{tpu_custom_call.1} parent=1 // pred_fallthru
      _
    // Predicated region
    $region6: #{tpu_custom_call.1} parent=1 // pred_check
      _
    $region7: #{tpu_custom_call.1} parent=1 // pred_check_branch
      %14 = sbr.rel (0) target = $region9
    $region8: #{tpu_custom_call.1} parent=1 // pred_region
      %s16 = ssub.s32 64, 64
      %17 = vsyncadd [#allocation4], %s16
      %s19 = sshll.u32 [#allocation3], 4
      %s20 = int_to_ptr.vmem [resolvable:$true] %s19
      %22 = dma.hbm_to_vmem [thread:$0]  %s1, 64, %s20, [#allocation4]
    $region9: #{tpu_custom_call.1} parent=1 // pred_fallthru
      _
    // Predicated region
    $region10: #{tpu_custom_call.1} parent=1 // pred_check
      _
    $region11: #{tpu_custom_call.1} parent=1 // pred_check_branch
      %24 = sbr.rel (0) target = $region13
    $region12: #{tpu_custom_call.1} parent=1 // pred_region
      _
    $region13: #{tpu_custom_call.1} parent=1 // pred_fallthru
      _
    // Predicated region
    $region14: #{tpu_custom_call.1} parent=1 // pred_check
      _
    $region15: #{tpu_custom_call.1} parent=1 // pred_check_branch
      %26 = sbr.rel (0) target = $region17
    $region16: #{tpu_custom_call.1} parent=1 // pred_region
      %27 = dma.done [#allocation4], 64
    $region17: #{tpu_custom_call.1} parent=1 // pred_fallthru
      _
    %v28 = vld [vmem:[#allocation3] sm:$0xf]
    %v29 = vld [vmem:[%s2] sm:$0x3]
    %v31 = vlaneseq
    %v32 = vshrl.u32 %v31, 7
    %v33 = vsub.s32 0, %v32
    %v34 = vrot.slane %v29, %v33
    %v35 = vlaneseq
    %v36 = vshrl.u32 %v35, 7
    %v37 = vsub.s32 1, %v36
    %v38 = vrot.slane %v29, %v37
    %v39 = vcombine.low %v34, %v38
    %v41 = vunpack.c.l.s4 1983009808
    %v42 = vunpack.c.0.s8 %v41
    %v43 = vlaneseq
    %v44 = vshrl.u32 %v43, 7
    %v45 = vsub.s32 %v42, %v44
    %v46 = vrot.slane %v39, %v45
    %v48 = vadd.f32 %v28, %v46
    %v49 = vlaneseq
    %v50 = vshrl.u32 %v49, 7
    %v51 = vlaneseq
    %v52 = vand.u32 %v51, 127
    %v53 = vadd.s32 %v52, 128
    %s54 = smul.u32 0, 256
    %v55 = vmul.u32 %v50, 256
    %v56 = vstv %s54
    %v57 = vadd.s32 %v55, %v56
    %v58 = vadd.s32 %v57, %v52
    %v59 = vadd.s32 %v57, %v53
    %s60 = sld [smem:[#allocation2]]
    %s61 = smul.u32 %s60, 2654435769
    %v62 = vstv %s61
    %v63 = vxor.u32 %v58, %v62
    %v64 = vxor.u32 %v59, %v62
    %v65 = vshrl.u32 %v63, 16
    %v66 = vshrl.u32 %v64, 16
    %v67 = vxor.u32 %v63, %v65
    %v68 = vxor.u32 %v64, %v66
    %v69 = vmul.u32 %v67, 2146121005
    %v70 = vmul.u32 %v68, 2146121005
    %v71 = vshrl.u32 %v69, 15
    %v72 = vshrl.u32 %v70, 15
    %v73 = vxor.u32 %v69, %v71
    %v74 = vxor.u32 %v70, %v72
    %v75 = vmul.u32 %v73, 2221713035
    %v76 = vmul.u32 %v74, 2221713035
    %v77 = vshrl.u32 %v75, 16
    %v78 = vshrl.u32 %v76, 16
    %v79 = vxor.u32 %v75, %v77
    %v80 = vxor.u32 %v76, %v78
    %vm81 = vcmp.ge.u32.totalorder %v79, 429496730
    %vm82 = vcmp.ge.u32.totalorder %v80, 429496730
    %v83 = vmul.f32 %v48, 1.1111112
    %v86 = vunpack.c.l.s4 1983009808
    %v87 = vunpack.c.0.s8 %v86
    %v88 = vlaneseq
    %v89 = vshrl.u32 %v88, 7
    %v90 = vsub.s32 %v87, %v89
    %v91 = vrot.slane %v83, %v90
    %v92 = vcombine.high %v91, %v91
    %v95 = vsel %vm81, %v91, 0.0
    %v96 = vsel %vm82, %v92, 0.0
    %v99 = vcombine.low %v95, %v96
    %v101 = vunpack.c.l.s4 1983009808
    %v102 = vunpack.c.0.s8 %v101
    %v103 = vlaneseq
    %v104 = vshrl.u32 %v103, 7
    %v105 = vsub.s32 %v102, %v104
    %v106 = vrot.slane %v99, %v105
    %108 = vst [vmem:[#allocation6] sm:$0xf] %v106
    // Predicated region
    $region18: #{tpu_custom_call.1} parent=1 // pred_check
      _
    $region19: #{tpu_custom_call.1} parent=1 // pred_check_branch
      %110 = sbr.rel (0) target = $region21
    $region20: #{tpu_custom_call.1} parent=1 // pred_region
      %s112 = ssub.s32 64, 64
      %113 = vsyncadd [#allocation5], %s112
      %s115 = sshll.u32 [#allocation6], 4
      %s116 = int_to_ptr.vmem [resolvable:$true] %s115
      %118 = dma.vmem_to_hbm [thread:$0]  %s116, 64, %s3, [#allocation5]
    $region21: #{tpu_custom_call.1} parent=1 // pred_fallthru
      _
    // Predicated region
    $region22: #{tpu_custom_call.1} parent=1 // pred_check
      _
    $region23: #{tpu_custom_call.1} parent=1 // pred_check_branch
      %120 = sbr.rel (0) target = $region25
    $region24: #{tpu_custom_call.1} parent=1 // pred_region
      %121 = dma.done [#allocation5], 64
    $region25: #{tpu_custom_call.1} parent=1 // pred_fallthru
      _
    %122 = vsyncpa [#allocation4], 1
    %123 = vsyncpa [#allocation5], 1

</llo_original>
